<compile_context>
chip_gen: v6e
topology: v6e:2x2x1
jax: 0.10.0
libtpu: 0.0.40
codegen_flags: <defaults>
</compile_context>

<pallas_src>
import functools

import jax
import jax.numpy as jnp
from jax.experimental import pallas as pl
from jax.experimental.pallas import tpu as pltpu


def _attention_kernel(x_ref, gamma_ref, beta_ref, wqkv_ref, wo_ref, bo_ref,
                      o_ref, *, heads, dim_head, scale, eps):
    inner = heads * dim_head

    # ---- LayerNorm over last dim; statistics always in f32 (matches
    #      nn.LayerNorm(dim) even if x ever arrives as bf16). ----
    x = x_ref[0].astype(jnp.float32)                      # (N, D) f32
    mean = jnp.mean(x, axis=-1, keepdims=True)
    xc = x - mean
    var = jnp.mean(xc * xc, axis=-1, keepdims=True)
    xn = xc * jax.lax.rsqrt(var + eps)
    xn = xn * gamma_ref[...] + beta_ref[...]              # (N, D) f32

    # ---- ONE combined lane-dense QKV projection (bf16 in, f32 acc). ----
    qkv = jnp.dot(xn.astype(jnp.bfloat16), wqkv_ref[...],
                  preferred_element_type=jnp.float32)     # (N, 3*inner) f32

    # ---- View heads out of the combined result (lane slices + stack). ----
    def split_heads(base, scl=None):
        cols = []
        for h in range(heads):
            c = qkv[:, base + h * dim_head: base + (h + 1) * dim_head]
            cols.append(c if scl is None else c * scl)
        return jnp.stack(cols, axis=0).astype(jnp.bfloat16)      # (h, N, dh)

    q = split_heads(0, scale)            # softmax scale applied in f32 (exact)
    k = split_heads(inner)
    v = split_heads(2 * inner)

    # ---- Head-batched attention scores; softmax stats in f32 (v5e-safe). ----
    s = jnp.einsum('hnd,hmd->hnm', q, k,
                   preferred_element_type=jnp.float32)    # (h, N, N) f32
    m = jnp.max(s, axis=-1, keepdims=True)
    e = jnp.exp(s - m)                                    # f32 exp (EUP)
    denom = jnp.sum(e, axis=-1, keepdims=True)            # (h, N, 1) f32

    # ---- Deferred softmax normalization: PV matmul on the unnormalized exp,
    #      then scale the (h, N, dh) result by 1/denom (approx reciprocal;
    #      inference-grade accuracy). ----
    ov = jnp.einsum('hnm,hmd->hnd', e.astype(jnp.bfloat16), v,
                    preferred_element_type=jnp.float32)   # (h, N, dh) f32
    ov = ov * pl.reciprocal(denom, approx=True)

    # ---- Merge heads (lane concat) + ONE output projection (inner-deep
    #      contraction); no (h, N, D) intermediate is materialized. ----
    merged = jnp.concatenate([ov[h] for h in range(heads)], axis=-1)  # (N, inner)
    out = jnp.dot(merged.astype(jnp.bfloat16), wo_ref[...],
                  preferred_element_type=jnp.float32) + bo_ref[...]   # (N, D)
    o_ref[0] = out.astype(o_ref.dtype)
    # TODO(synk): Dropout layers are identity (p=0.0 / eval mode); not modeled.


def attention_forward(x, gamma, beta, w_qkv, w_out, b_out, *, heads, dim_head,
                      eps=1e-5):
    """x: (B, N, D); w_qkv: (D, 3*heads*dim_head); w_out: (heads*dim_head, D)."""
    B, N, D = x.shape
    inner = heads * dim_head
    assert w_qkv.shape == (D, 3 * inner) and w_out.shape == (inner, D)

    # One-time host-side prep: bf16 weights for the MXU, 2-D scale/bias rows.
    wqkv16 = w_qkv.astype(jnp.bfloat16)
    wo16 = w_out.astype(jnp.bfloat16)
    gamma2 = gamma.reshape(1, D).astype(jnp.float32)
    beta2 = beta.reshape(1, D).astype(jnp.float32)
    bo2 = b_out.reshape(1, D).astype(jnp.float32)

    kernel = functools.partial(_attention_kernel, heads=heads,
                               dim_head=dim_head, scale=dim_head ** -0.5,
                               eps=eps)

    def const(shape):
        return pl.BlockSpec(shape, lambda b: tuple(0 for _ in shape))
    # TODO(synk): on v7x, pass pipeline_mode=pl.Buffered(1) on these
    # constant-index weight specs to halve their double-buffered VMEM footprint.

    flops = (2 * B * N * D * 3 * inner               # combined QKV projection
             + 4 * B * heads * N * N * dim_head      # scores + PV matmuls
             + 2 * B * N * inner * D)                # output projection
    transcendentals = B * heads * N * N
    bytes_accessed = (2 * B * N * D * x.dtype.itemsize       # x in + o out
                      + (3 * D * inner + inner * D) * 2      # bf16 weights
                      + 3 * D * 4)                           # gamma/beta/bias

    # VMEM budget: ~3/4 of physical, capped at 96 MiB (=> ~96 MiB on the
    # 128 MiB v5e/v6e, ~48 MiB on the 64 MiB v7x).
    try:
        vmem_cap = pltpu.get_tpu_info().vmem_capacity_bytes
    except Exception:
        vmem_cap = 64 * 1024 * 1024
    vmem_limit = int(min(vmem_cap * 3 // 4, 96 * 1024 * 1024))

    return pl.pallas_call(
        kernel,
        out_shape=jax.ShapeDtypeStruct((B, N, D), x.dtype),
        grid_spec=pltpu.PrefetchScalarGridSpec(
            num_scalar_prefetch=0,
            grid=(B,),
            in_specs=[
                pl.BlockSpec((1, N, D), lambda b: (b, 0, 0)),    # x
                const((1, D)),                                   # LN gamma
                const((1, D)),                                   # LN beta
                const((D, 3 * inner)),                           # combined W_qkv
                const((inner, D)),                               # W_out
                const((1, D)),                                   # b_out
            ],
            out_specs=pl.BlockSpec((1, N, D), lambda b: (b, 0, 0)),
        ),
        compiler_params=pltpu.CompilerParams(
            dimension_semantics=("parallel",),
            vmem_limit_bytes=vmem_limit,
        ),
        cost_estimate=pl.CostEstimate(flops=flops,
                                      transcendentals=transcendentals,
                                      bytes_accessed=bytes_accessed),
    )(x, gamma2, beta2, wqkv16, wo16, bo2)
    # TODO(synk): for long sequences (N >~ 512, especially v7x's 64 MiB VMEM)
    # switch to flash-style q/kv tiling: grid (B, Nq_tiles, Nkv_tiles) with kv
    # as a trailing "arbitrary" axis, online-softmax m/l/acc VMEM scratch and
    # the output written on the last kv step via pl.when; also batch several
    # batch elements per grid step when N*D is tiny to amortize grid overhead.


def _reference(x, gamma, beta, w_qkv, w_out, b_out, *, heads, dim_head, eps=1e-5):
    B, N, D = x.shape
    inner = heads * dim_head
    mean = jnp.mean(x, axis=-1, keepdims=True)
    var = jnp.mean((x - mean) ** 2, axis=-1, keepdims=True)
    xn = (x - mean) / jnp.sqrt(var + eps) * gamma + beta
    qkv = xn @ w_qkv
    q, k, v = jnp.split(qkv, 3, axis=-1)
    reshape_h = lambda t: t.reshape(B, N, heads, dim_head).transpose(0, 2, 1, 3)
    q, k, v = map(reshape_h, (q, k, v))
    dots = jnp.einsum('bhnd,bhmd->bhnm', q, k) * (dim_head ** -0.5)
    attn = jax.nn.softmax(dots, axis=-1)
    out = jnp.einsum('bhnm,bhmd->bhnd', attn, v)
    out = out.transpose(0, 2, 1, 3).reshape(B, N, inner)
    return out @ w_out + b_out


if __name__ == "__main__":
    # Small shapes consistent with the module: dim=32, heads=2, dim_head=16.
    B, N, D = 2, 8, 32
    heads, dim_head = 2, 16
    inner = heads * dim_head

    key = jax.random.PRNGKey(0)
    kx, kqkv, kout, kb, kg, kbeta = jax.random.split(key, 6)

    x = jax.random.normal(kx, (B, N, D), dtype=jnp.float32)
    gamma = 1.0 + 0.1 * jax.random.normal(kg, (D,), jnp.float32)   # LN weight
    beta = 0.05 * jax.random.normal(kbeta, (D,), jnp.float32)      # LN bias
    # Linear weights stored pre-transposed: (in, out).
    w_qkv = jax.random.normal(kqkv, (D, 3 * inner), jnp.float32) * 0.05
    w_out = jax.random.normal(kout, (inner, D), jnp.float32) * 0.05
    b_out = jax.random.normal(kb, (D,), jnp.float32) * 0.01

    y = attention_forward(x, gamma, beta, w_qkv, w_out, b_out,
                          heads=heads, dim_head=dim_head)
    y = jax.block_until_ready(y)

    y_ref = _reference(x, gamma, beta, w_qkv, w_out, b_out,
                       heads=heads, dim_head=dim_head)
    assert y.shape == (B, N, D)
    # Tolerance loosened vs. pure-f32: MXU operands are bf16 (f32 accumulation,
    # f32 softmax stats) and the softmax denominator uses approx reciprocal.
    assert jnp.allclose(y, y_ref, atol=2e-2, rtol=2e-2), "mismatch vs JAX reference"
    print("KERNEL_OK")
</pallas_src>

<mosaic_0001>
module attributes {stable_mosaic.version = 11 : i64} {
  func.func @_attention_kernel(%arg0: i32, %arg1: memref<1x8x32xf32, #tpu.memory_space<vmem>>, %arg2: memref<1x32xf32, #tpu.memory_space<vmem>>, %arg3: memref<1x32xf32, #tpu.memory_space<vmem>>, %arg4: memref<32x96xbf16, #tpu.memory_space<vmem>>, %arg5: memref<32x32xbf16, #tpu.memory_space<vmem>>, %arg6: memref<1x32xf32, #tpu.memory_space<vmem>>, %arg7: memref<1x8x32xf32, #tpu.memory_space<vmem>>) attributes {dimension_semantics = [#tpu.dimension_semantics<parallel>], iteration_bounds = array<i64: 2>, scalar_prefetch = 0 : i64, scratch_operands = 0 : i64, tpu.core_type = #tpu.core_type<tc>, window_params = [{transform_indices = @transform_0, window_bounds = array<i64: 1, 8, 32>}, {pipeline_mode = #tpu.pipeline_mode<synchronous>, transform_indices = @transform_1, window_bounds = array<i64: 1, 32>}, {pipeline_mode = #tpu.pipeline_mode<synchronous>, transform_indices = @transform_2, window_bounds = array<i64: 1, 32>}, {pipeline_mode = #tpu.pipeline_mode<synchronous>, transform_indices = @transform_3, window_bounds = array<i64: 32, 96>}, {pipeline_mode = #tpu.pipeline_mode<synchronous>, transform_indices = @transform_4, window_bounds = array<i64: 32, 32>}, {pipeline_mode = #tpu.pipeline_mode<synchronous>, transform_indices = @transform_5, window_bounds = array<i64: 1, 32>}, {transform_indices = @transform_6, window_bounds = array<i64: 1, 8, 32>}]} {
    %c0 = arith.constant 0 : index
    %c0_0 = arith.constant 0 : index
    %c0_1 = arith.constant 0 : index
    %0 = vector.load %arg1[%c0, %c0_0, %c0_1] : memref<1x8x32xf32, #tpu.memory_space<vmem>>, vector<1x8x32xf32>
    %1 = vector.shape_cast %0 : vector<1x8x32xf32> to vector<8x32xf32>
    %cst = arith.constant dense<0.000000e+00> : vector<8xf32>
    %2 = vector.multi_reduction <add>, %1, %cst [1] : vector<8x32xf32> to vector<8xf32>
    %3 = vector.shape_cast %2 : vector<8xf32> to vector<8x1xf32>
    %cst_2 = arith.constant 3.200000e+01 : f32
    %4 = vector.broadcast %cst_2 : f32 to vector<8x1xf32>
    %5 = arith.divf %3, %4 : vector<8x1xf32>
    %6 = vector.broadcast %5 : vector<8x1xf32> to vector<8x32xf32>
    %7 = arith.subf %1, %6 : vector<8x32xf32>
    %8 = arith.mulf %7, %7 : vector<8x32xf32>
    %cst_3 = arith.constant dense<0.000000e+00> : vector<8xf32>
    %9 = vector.multi_reduction <add>, %8, %cst_3 [1] : vector<8x32xf32> to vector<8xf32>
    %10 = vector.shape_cast %9 : vector<8xf32> to vector<8x1xf32>
    %cst_4 = arith.constant 3.200000e+01 : f32
    %11 = vector.broadcast %cst_4 : f32 to vector<8x1xf32>
    %12 = arith.divf %10, %11 : vector<8x1xf32>
    %cst_5 = arith.constant 9.99999974E-6 : f32
    %13 = vector.broadcast %cst_5 : f32 to vector<8x1xf32>
    %14 = arith.addf %12, %13 : vector<8x1xf32>
    %15 = math.rsqrt %14 : vector<8x1xf32>
    %16 = vector.broadcast %15 : vector<8x1xf32> to vector<8x32xf32>
    %17 = arith.mulf %7, %16 : vector<8x32xf32>
    %c0_6 = arith.constant 0 : index
    %c0_7 = arith.constant 0 : index
    %18 = vector.load %arg2[%c0_6, %c0_7] : memref<1x32xf32, #tpu.memory_space<vmem>>, vector<1x32xf32>
    %19 = vector.broadcast %18 : vector<1x32xf32> to vector<8x32xf32>
    %20 = arith.mulf %17, %19 : vector<8x32xf32>
    %c0_8 = arith.constant 0 : index
    %c0_9 = arith.constant 0 : index
    %21 = vector.load %arg3[%c0_8, %c0_9] : memref<1x32xf32, #tpu.memory_space<vmem>>, vector<1x32xf32>
    %22 = vector.broadcast %21 : vector<1x32xf32> to vector<8x32xf32>
    %23 = arith.addf %20, %22 : vector<8x32xf32>
    %24 = arith.truncf %23 : vector<8x32xf32> to vector<8x32xbf16>
    %c0_10 = arith.constant 0 : index
    %c0_11 = arith.constant 0 : index
    %25 = vector.load %arg4[%c0_10, %c0_11] : memref<32x96xbf16, #tpu.memory_space<vmem>>, vector<32x96xbf16>
    %cst_12 = arith.constant dense<0.000000e+00> : vector<8x96xf32>
    %26 = tpu.matmul %24, %25, %cst_12 {dimension_numbers = #tpu.dot_dimension_numbers<[1], [0], [0], [1], [0, 0, 1, 1], [], []>} : vector<8x32xbf16>, vector<32x96xbf16>, vector<8x96xf32> -> vector<8x96xf32>
    %27 = vector.extract_strided_slice %26 {offsets = [0, 0], sizes = [8, 16], strides = [1, 1]} : vector<8x96xf32> to vector<8x16xf32>
    %cst_13 = arith.constant 2.500000e-01 : f32
    %28 = vector.broadcast %cst_13 : f32 to vector<8x16xf32>
    %29 = arith.mulf %27, %28 : vector<8x16xf32>
    %30 = vector.extract_strided_slice %26 {offsets = [0, 16], sizes = [8, 16], strides = [1, 1]} : vector<8x96xf32> to vector<8x16xf32>
    %cst_14 = arith.constant 2.500000e-01 : f32
    %31 = vector.broadcast %cst_14 : f32 to vector<8x16xf32>
    %32 = arith.mulf %30, %31 : vector<8x16xf32>
    %33 = vector.shape_cast %29 : vector<8x16xf32> to vector<1x8x16xf32>
    %34 = vector.shape_cast %32 : vector<8x16xf32> to vector<1x8x16xf32>
    %35 = tpu.concatenate %33, %34 in 0 : vector<1x8x16xf32>, vector<1x8x16xf32> -> vector<2x8x16xf32>
    %36 = arith.truncf %35 : vector<2x8x16xf32> to vector<2x8x16xbf16>
    %37 = vector.extract_strided_slice %26 {offsets = [0, 32], sizes = [8, 16], strides = [1, 1]} : vector<8x96xf32> to vector<8x16xf32>
    %38 = vector.extract_strided_slice %26 {offsets = [0, 48], sizes = [8, 16], strides = [1, 1]} : vector<8x96xf32> to vector<8x16xf32>
    %39 = vector.shape_cast %37 : vector<8x16xf32> to vector<1x8x16xf32>
    %40 = vector.shape_cast %38 : vector<8x16xf32> to vector<1x8x16xf32>
    %41 = tpu.concatenate %39, %40 in 0 : vector<1x8x16xf32>, vector<1x8x16xf32> -> vector<2x8x16xf32>
    %42 = arith.truncf %41 : vector<2x8x16xf32> to vector<2x8x16xbf16>
    %43 = vector.extract_strided_slice %26 {offsets = [0, 64], sizes = [8, 16], strides = [1, 1]} : vector<8x96xf32> to vector<8x16xf32>
    %44 = vector.extract_strided_slice %26 {offsets = [0, 80], sizes = [8, 16], strides = [1, 1]} : vector<8x96xf32> to vector<8x16xf32>
    %45 = vector.shape_cast %43 : vector<8x16xf32> to vector<1x8x16xf32>
    %46 = vector.shape_cast %44 : vector<8x16xf32> to vector<1x8x16xf32>
    %47 = tpu.concatenate %45, %46 in 0 : vector<1x8x16xf32>, vector<1x8x16xf32> -> vector<2x8x16xf32>
    %48 = arith.truncf %47 : vector<2x8x16xf32> to vector<2x8x16xbf16>
    "tpu.trace_start"() <{level = 10 : i32, message = "hnd,hmd->hnm"}> : () -> ()
    %cst_15 = arith.constant dense<0.000000e+00> : vector<2x8x8xf32>
    %49 = tpu.matmul %36, %42, %cst_15 {dimension_numbers = #tpu.dot_dimension_numbers<[2], [2], [1], [1], [0, 0, 0, 1, 1, 1], [0], [0]>} : vector<2x8x16xbf16>, vector<2x8x16xbf16>, vector<2x8x8xf32> -> vector<2x8x8xf32>
    "tpu.trace_stop"() : () -> ()
    %cst_16 = arith.constant dense<0xFF800000> : vector<2x8xf32>
    %50 = vector.multi_reduction <maximumf>, %49, %cst_16 [2] : vector<2x8x8xf32> to vector<2x8xf32>
    %51 = vector.shape_cast %50 : vector<2x8xf32> to vector<2x8x1xf32>
    %52 = vector.broadcast %51 : vector<2x8x1xf32> to vector<2x8x8xf32>
    %53 = arith.subf %49, %52 : vector<2x8x8xf32>
    %54 = math.exp %53 : vector<2x8x8xf32>
    %cst_17 = arith.constant dense<0.000000e+00> : vector<2x8xf32>
    %55 = vector.multi_reduction <add>, %54, %cst_17 [2] : vector<2x8x8xf32> to vector<2x8xf32>
    %56 = vector.shape_cast %55 : vector<2x8xf32> to vector<2x8x1xf32>
    %57 = arith.truncf %54 : vector<2x8x8xf32> to vector<2x8x8xbf16>
    "tpu.trace_start"() <{level = 10 : i32, message = "hnm,hmd->hnd"}> : () -> ()
    %cst_18 = arith.constant dense<0.000000e+00> : vector<2x8x16xf32>
    %58 = tpu.matmul %57, %48, %cst_18 {dimension_numbers = #tpu.dot_dimension_numbers<[2], [1], [1], [2], [0, 0, 0, 1, 1, 2], [0], [0]>} : vector<2x8x8xbf16>, vector<2x8x16xbf16>, vector<2x8x16xf32> -> vector<2x8x16xf32>
    "tpu.trace_stop"() : () -> ()
    %59 = tpu.reciprocal %56 {approx = true} : vector<2x8x1xf32> -> vector<2x8x1xf32>
    %60 = vector.broadcast %59 : vector<2x8x1xf32> to vector<2x8x16xf32>
    %61 = arith.mulf %58, %60 : vector<2x8x16xf32>
    %62 = vector.extract_strided_slice %61 {offsets = [0, 0, 0], sizes = [1, 8, 16], strides = [1, 1, 1]} : vector<2x8x16xf32> to vector<1x8x16xf32>
    %63 = vector.shape_cast %62 : vector<1x8x16xf32> to vector<8x16xf32>
    %64 = vector.extract_strided_slice %61 {offsets = [1, 0, 0], sizes = [1, 8, 16], strides = [1, 1, 1]} : vector<2x8x16xf32> to vector<1x8x16xf32>
    %65 = vector.shape_cast %64 : vector<1x8x16xf32> to vector<8x16xf32>
    %66 = tpu.concatenate %63, %65 in 1 : vector<8x16xf32>, vector<8x16xf32> -> vector<8x32xf32>
    %67 = arith.truncf %66 : vector<8x32xf32> to vector<8x32xbf16>
    %c0_19 = arith.constant 0 : index
    %c0_20 = arith.constant 0 : index
    %68 = vector.load %arg5[%c0_19, %c0_20] : memref<32x32xbf16, #tpu.memory_space<vmem>>, vector<32x32xbf16>
    %cst_21 = arith.constant dense<0.000000e+00> : vector<8x32xf32>
    %69 = tpu.matmul %67, %68, %cst_21 {dimension_numbers = #tpu.dot_dimension_numbers<[1], [0], [0], [1], [0, 0, 1, 1], [], []>} : vector<8x32xbf16>, vector<32x32xbf16>, vector<8x32xf32> -> vector<8x32xf32>
    %c0_22 = arith.constant 0 : index
    %c0_23 = arith.constant 0 : index
    %70 = vector.load %arg6[%c0_22, %c0_23] : memref<1x32xf32, #tpu.memory_space<vmem>>, vector<1x32xf32>
    %71 = vector.broadcast %70 : vector<1x32xf32> to vector<8x32xf32>
    %72 = arith.addf %69, %71 : vector<8x32xf32>
    %c0_24 = arith.constant 0 : index
    %c0_25 = arith.constant 0 : index
    %c0_26 = arith.constant 0 : index
    %73 = vector.load %arg7[%c0_24, %c0_25, %c0_26] : memref<1x8x32xf32, #tpu.memory_space<vmem>>, vector<1x8x32xf32>
    %74 = vector.shape_cast %73 : vector<1x8x32xf32> to vector<8x32xf32>
    %75 = vector.shape_cast %72 : vector<8x32xf32> to vector<1x8x32xf32>
    tpu.vector_store %arg7[%c0_24, %c0_25, %c0_26], %75 {strides = array<i32>} : memref<1x8x32xf32, #tpu.memory_space<vmem>>, vector<1x8x32xf32>,
    return
  }
  func.func @transform_0(%arg0: i32) -> (i32, i32, i32) {
    %c0_i32 = arith.constant 0 : i32
    %c0_i32_0 = arith.constant 0 : i32
    %c0_i32_1 = arith.constant 0 : i32
    return %arg0, %c0_i32, %c0_i32_0 : i32, i32, i32
  }
  func.func @transform_1(%arg0: i32) -> (i32, i32) {
    %c0_i32 = arith.constant 0 : i32
    %c0_i32_0 = arith.constant 0 : i32
    %c0_i32_1 = arith.constant 0 : i32
    return %c0_i32, %c0_i32_0 : i32, i32
  }
  func.func @transform_2(%arg0: i32) -> (i32, i32) {
    %c0_i32 = arith.constant 0 : i32
    %c0_i32_0 = arith.constant 0 : i32
    %c0_i32_1 = arith.constant 0 : i32
    return %c0_i32, %c0_i32_0 : i32, i32
  }
  func.func @transform_3(%arg0: i32) -> (i32, i32) {
    %c0_i32 = arith.constant 0 : i32
    %c0_i32_0 = arith.constant 0 : i32
    %c0_i32_1 = arith.constant 0 : i32
    return %c0_i32, %c0_i32_0 : i32, i32
  }
  func.func @transform_4(%arg0: i32) -> (i32, i32) {
    %c0_i32 = arith.constant 0 : i32
    %c0_i32_0 = arith.constant 0 : i32
    %c0_i32_1 = arith.constant 0 : i32
    return %c0_i32, %c0_i32_0 : i32, i32
  }
  func.func @transform_5(%arg0: i32) -> (i32, i32) {
    %c0_i32 = arith.constant 0 : i32
    %c0_i32_0 = arith.constant 0 : i32
    %c0_i32_1 = arith.constant 0 : i32
    return %c0_i32, %c0_i32_0 : i32, i32
  }
  func.func @transform_6(%arg0: i32) -> (i32, i32, i32) {
    %c0_i32 = arith.constant 0 : i32
    %c0_i32_0 = arith.constant 0 : i32
    %c0_i32_1 = arith.constant 0 : i32
    return %arg0, %c0_i32, %c0_i32_0 : i32, i32, i32
  }
}

</mosaic_0001>

<llo_original>
// kernel: tpu_custom_call.1
$region0: #{tpu_custom_call.1}
  #allocation0 [shape = 'u32[]', space=smem, size = 0x4, offset = 0x4, fixed_abs, tag = 'smem constant byte address 0x4 - core index']
  #allocation1 [shape = 'u32[144,128]{1,0:T(1,128)}', space=vmem, size = 0x12000, scoped, tag = 'internal scratch']
  %s0 = inlined_call_operand.hbm [shape: f32[2,8,32], index: 0, kind: input, shape index: {}]
  %s1 = inlined_call_operand.vmem [shape: f32[1,32], index: 1, kind: input, shape index: {}]
  %s2 = inlined_call_operand.vmem [shape: f32[1,32], index: 2, kind: input, shape index: {}]
  %s3 = inlined_call_operand.hbm [shape: bf16[32,96], index: 3, kind: input, shape index: {}]
  %s4 = inlined_call_operand.hbm [shape: bf16[32,32], index: 4, kind: input, shape index: {}]
  %s5 = inlined_call_operand.vmem [shape: f32[1,32], index: 5, kind: input, shape index: {}]
  %s6 = inlined_call_operand.hbm [shape: f32[2,8,32], index: 6, kind: output, shape index: {}]
  %s7 = sld [smem:[#allocation0]]
  $region69: #{tpu_custom_call.1} parent=0
    _
  %s9 = ssub.s32 1, %s7
  %s10 = scalar_select 0, %s9, %s7
  $region1: #{tpu_custom_call.1} parent=0
    #allocation2 [shape = 'u8[8192]{0}', space=vmem, size = 0x2000, scoped, tag = 'input window, operand 0']
    #allocation3 [shape = 's32[2]{0}', space=sflag, size = 0x8, scoped, tag = 'scoped memory for tpu_custom_call.1']
    #allocation4 [shape = 's32[2]{0}', space=sflag, size = 0x8, scoped, tag = 'scoped memory for tpu_custom_call.1']
    #allocation5 [shape = 'u8[8192]{0}', space=vmem, size = 0x2000, scoped, tag = 'input window, operand 3, single buffered']
    #allocation6 [shape = 's32[1]{0}', space=sflag, size = 0x4, scoped, tag = 'scoped memory for tpu_custom_call.1']
    #allocation7 [shape = 'u8[8192]{0}', space=vmem, size = 0x2000, scoped, tag = 'input window, operand 4, single buffered']
    #allocation8 [shape = 'u8[8192]{0}', space=vmem, size = 0x2000, scoped, tag = 'output window, operand 0']
    %11 = vsyncpa [#allocation3], 0
    %s12 = scalar_lea.sflag [#allocation3], 1
    %13 = vsyncpa %s12, 0
    %14 = vsyncpa [#allocation6], 0
    %15 = vsyncpa [#allocation4], 0
    %s16 = scalar_lea.sflag [#allocation4], 1
    %17 = vsyncpa %s16, 0
    loop: start=0, step=1, limit=4
    $region2: #{tpu_custom_call.1} parent=1 // loop_pre_header
      _
    $region3: #{tpu_custom_call.1} parent=1 // loop_header
      %s19 = sphi 0, %s23
      %p20 = scmp.ge.s32.totalorder %s19, 4
      %s29 = sphi 0, %s31
      %s32 = sphi 0, %s29
      %s33 = sphi 0, %s32
      %s49 = sphi 0, %s33
      %s53 = sphi 0, %s53
      %s55 = sphi 0, %s53
      %s56 = sphi 0, %s55
      %s70 = sphi 0, %s56
      %s74 = sphi 0, %s74
      %s76 = sphi 0, %s74
      %s77 = sphi 0, %s76
      %s91 = sphi 0, %s77
      %s95 = sphi 0, %s95
      %s97 = sphi 0, %s95
      %s98 = sphi 0, %s97
      %s112 = sphi 0, %s98
      %s116 = sphi 0, %s116
      %s118 = sphi 0, %s116
      %s119 = sphi 0, %s118
      %s133 = sphi 0, %s119
      %s137 = sphi 0, %s137
      %s139 = sphi 0, %s137
      %s140 = sphi 0, %s139
      %s154 = sphi 0, %s140
      %s160 = sphi 0, %s162
      %s163 = sphi 0, %s160
      %s164 = sphi 0, %s163
      %s180 = sphi 0, %s164
    $region4: #{tpu_custom_call.1} parent=1 // loop_header_branch
      %22 = sbr.rel (%p20) target = $region8
    $region5: #{tpu_custom_call.1} parent=1 // loop_body
      %s24 = ssub.s32 %s19, 1
      %s25 = ssub.s32 %s19, 2
      %s26 = sadd.s32 %s19, 1
      %s27 = ssub.s32 %s19, %s26
      %p28 = scmp.eq.s32.totalorder %s27, 0
      %s30 = sadd.s32 %s29, 1
      %s31 = scalar_select %p28, %s29, %s30
      %p34 = pneg %p28
      %p35 = scmp.eq.s32.totalorder %s19, 1
      %p36 = por %p34, %p35
      %p37 = scmp.ne.s32.totalorder %s29, %s32
      %p38 = scmp.eq.s32.totalorder %s19, 0
      %p39 = por %p37, %p38
      %p40 = scmp.ne.s32.totalorder %s29, %s32
      %p41 = scmp.eq.s32.totalorder %s24, 1
      %p42 = por %p40, %p41
      %p43 = scmp.ne.s32.totalorder %s32, %s33
      %p44 = scmp.eq.s32.totalorder %s24, 0
      %p45 = por %p43, %p44
      %p46 = scmp.ne.s32.totalorder %s32, %s33
      %p47 = scmp.eq.s32.totalorder %s25, 1
      %p48 = por %p46, %p47
      %p50 = scmp.ne.s32.totalorder %s33, %s49
      %p51 = scmp.eq.s32.totalorder %s25, 0
      %p52 = por %p50, %p51
      %s54 = sadd.s32 %s53, 1
      %p57 = scmp.eq.s32.totalorder %s19, 1
      %p58 = scmp.ne.s32.totalorder %s53, %s55
      %p59 = scmp.eq.s32.totalorder %s19, 0
      %p60 = por %p58, %p59
      %p61 = scmp.ne.s32.totalorder %s53, %s55
      %p62 = scmp.eq.s32.totalorder %s24, 1
      %p63 = por %p61, %p62
      %p64 = scmp.ne.s32.totalorder %s55, %s56
      %p65 = scmp.eq.s32.totalorder %s24, 0
      %p66 = por %p64, %p65
      %p67 = scmp.ne.s32.totalorder %s55, %s56
      %p68 = scmp.eq.s32.totalorder %s25, 1
      %p69 = por %p67, %p68
      %p71 = scmp.ne.s32.totalorder %s56, %s70
      %p72 = scmp.eq.s32.totalorder %s25, 0
      %p73 = por %p71, %p72
      %s75 = sadd.s32 %s74, 1
      %p78 = scmp.eq.s32.totalorder %s19, 1
      %p79 = scmp.ne.s32.totalorder %s74, %s76
      %p80 = scmp.eq.s32.totalorder %s19, 0
      %p81 = por %p79, %p80
      %p82 = scmp.ne.s32.totalorder %s74, %s76
      %p83 = scmp.eq.s32.totalorder %s24, 1
      %p84 = por %p82, %p83
      %p85 = scmp.ne.s32.totalorder %s76, %s77
      %p86 = scmp.eq.s32.totalorder %s24, 0
      %p87 = por %p85, %p86
      %p88 = scmp.ne.s32.totalorder %s76, %s77
      %p89 = scmp.eq.s32.totalorder %s25, 1
      %p90 = por %p88, %p89
      %p92 = scmp.ne.s32.totalorder %s77, %s91
      %p93 = scmp.eq.s32.totalorder %s25, 0
      %p94 = por %p92, %p93
      %s96 = sadd.s32 %s95, 1
      %p99 = scmp.eq.s32.totalorder %s19, 1
      %p100 = scmp.ne.s32.totalorder %s95, %s97
      %p101 = scmp.eq.s32.totalorder %s19, 0
      %p102 = por %p100, %p101
      %p103 = scmp.ne.s32.totalorder %s95, %s97
      %p104 = scmp.eq.s32.totalorder %s24, 1
      %p105 = por %p103, %p104
      %p106 = scmp.ne.s32.totalorder %s97, %s98
      %p107 = scmp.eq.s32.totalorder %s24, 0
      %p108 = por %p106, %p107
      %p109 = scmp.ne.s32.totalorder %s97, %s98
      %p110 = scmp.eq.s32.totalorder %s25, 1
      %p111 = por %p109, %p110
      %p113 = scmp.ne.s32.totalorder %s98, %s112
      %p114 = scmp.eq.s32.totalorder %s25, 0
      %p115 = por %p113, %p114
      %s117 = sadd.s32 %s116, 1
      %p120 = scmp.eq.s32.totalorder %s19, 1
      %p121 = scmp.ne.s32.totalorder %s116, %s118
      %p122 = scmp.eq.s32.totalorder %s19, 0
      %p123 = por %p121, %p122
      %p124 = scmp.ne.s32.totalorder %s116, %s118
      %p125 = scmp.eq.s32.totalorder %s24, 1
      %p126 = por %p124, %p125
      %p127 = scmp.ne.s32.totalorder %s118, %s119
      %p128 = scmp.eq.s32.totalorder %s24, 0
      %p129 = por %p127, %p128
      %p130 = scmp.ne.s32.totalorder %s118, %s119
      %p131 = scmp.eq.s32.totalorder %s25, 1
      %p132 = por %p130, %p131
      %p134 = scmp.ne.s32.totalorder %s119, %s133
      %p135 = scmp.eq.s32.totalorder %s25, 0
      %p136 = por %p134, %p135
      %s138 = sadd.s32 %s137, 1
      %p141 = scmp.eq.s32.totalorder %s19, 1
      %p142 = scmp.ne.s32.totalorder %s137, %s139
      %p143 = scmp.eq.s32.totalorder %s19, 0
      %p144 = por %p142, %p143
      %p145 = scmp.ne.s32.totalorder %s137, %s139
      %p146 = scmp.eq.s32.totalorder %s24, 1
      %p147 = por %p145, %p146
      %p148 = scmp.ne.s32.totalorder %s139, %s140
      %p149 = scmp.eq.s32.totalorder %s24, 0
      %p150 = por %p148, %p149
      %p151 = scmp.ne.s32.totalorder %s139, %s140
      %p152 = scmp.eq.s32.totalorder %s25, 1
      %p153 = por %p151, %p152
      %p155 = scmp.ne.s32.totalorder %s140, %s154
      %p156 = scmp.eq.s32.totalorder %s25, 0
      %p157 = por %p155, %p156
      %s158 = ssub.s32 %s19, %s26
      %p159 = scmp.eq.s32.totalorder %s158, 0
      %s161 = sadd.s32 %s160, 1
      %s162 = scalar_select %p159, %s160, %s161
      %p165 = pneg %p159
      %p166 = scmp.eq.s32.totalorder %s19, 1
      %p167 = por %p165, %p166
      %p168 = scmp.ne.s32.totalorder %s160, %s163
      %p169 = scmp.eq.s32.totalorder %s19, 0
      %p170 = por %p168, %p169
      %p171 = scmp.ne.s32.totalorder %s160, %s163
      %p172 = scmp.eq.s32.totalorder %s24, 1
      %p173 = por %p171, %p172
      %p174 = scmp.ne.s32.totalorder %s163, %s164
      %p175 = scmp.eq.s32.totalorder %s24, 0
      %p176 = por %p174, %p175
      %p177 = scmp.ne.s32.totalorder %s163, %s164
      %p178 = scmp.eq.s32.totalorder %s25, 1
      %p179 = por %p177, %p178
      %p181 = scmp.ne.s32.totalorder %s164, %s180
      %p182 = scmp.eq.s32.totalorder %s25, 0
      %p183 = por %p181, %p182
      %p184 = scmp.le.s32.totalorder 1, %s19
      %p185 = scmp.lt.s32.totalorder %s19, 3
      %p186 = pnand %p184, %p185
      %p187 = pneg %p186
      // Predicated region
      $region9: #{tpu_custom_call.1} parent=5 // pred_check
        _
      $region10: #{tpu_custom_call.1} parent=5 // pred_check_branch
        %189 = sbr.rel (%p186) target = $region12
      $region11: #{tpu_custom_call.1} parent=5 // pred_region
        %s190 = ssub.s32 %s19, 1
        // Predicated region
        $region13: #{tpu_custom_call.1} parent=11 // pred_check
          %p191 = pneg %p66
        $region14: #{tpu_custom_call.1} parent=11 // pred_check_branch
          %193 = sbr.rel (%p191) target = $region16
        $region15: #{tpu_custom_call.1} parent=11 // pred_region
          _
        $region16: #{tpu_custom_call.1} parent=11 // pred_fallthru
          _
        // Predicated region
        $region17: #{tpu_custom_call.1} parent=11 // pred_check
          %p194 = pneg %p87
        $region18: #{tpu_custom_call.1} parent=11 // pred_check_branch
          %196 = sbr.rel (%p194) target = $region20
        $region19: #{tpu_custom_call.1} parent=11 // pred_region
          _
        $region20: #{tpu_custom_call.1} parent=11 // pred_fallthru
          _
        // Predicated region
        $region21: #{tpu_custom_call.1} parent=11 // pred_check
          %p197 = pneg %p108
        $region22: #{tpu_custom_call.1} parent=11 // pred_check_branch
          %199 = sbr.rel (%p197) target = $region24
        $region23: #{tpu_custom_call.1} parent=11 // pred_region
          %s201 = ssub.s32 256, 256
          %202 = vsyncadd [#allocation6], %s201
          %s203 = sshll.u32 [#allocation5], 4
          %s204 = int_to_ptr.vmem [resolvable:$true] %s203
          %209 = dma.hbm_to_vmem [thread:$0]  %s3, 256, %s204, [#allocation6], 64, 64, 4
        $region24: #{tpu_custom_call.1} parent=11 // pred_fallthru
          _
        // Predicated region
        $region25: #{tpu_custom_call.1} parent=11 // pred_check
          %p210 = pneg %p129
        $region26: #{tpu_custom_call.1} parent=11 // pred_check_branch
          %212 = sbr.rel (%p210) target = $region28
        $region27: #{tpu_custom_call.1} parent=11 // pred_region
          %s214 = ssub.s32 256, 256
          %215 = vsyncadd [#allocation6], %s214
          %s216 = sshll.u32 [#allocation7], 4
          %s217 = int_to_ptr.vmem [resolvable:$true] %s216
          %222 = dma.hbm_to_vmem [thread:$0]  %s4, 256, %s217, [#allocation6], 64, 64, 4
        $region28: #{tpu_custom_call.1} parent=11 // pred_fallthru
          _
        // Predicated region
        $region29: #{tpu_custom_call.1} parent=11 // pred_check
          %p223 = pneg %p150
        $region30: #{tpu_custom_call.1} parent=11 // pred_check_branch
          %225 = sbr.rel (%p223) target = $region32
        $region31: #{tpu_custom_call.1} parent=11 // pred_region
          _
        $region32: #{tpu_custom_call.1} parent=11 // pred_fallthru
          _
      $region12: #{tpu_custom_call.1} parent=5 // pred_fallthru
        _
      %p226 = scmp.lt.s32.totalorder %s19, 2
      // Predicated region
      $region33: #{tpu_custom_call.1} parent=5 // pred_check
        %p227 = pneg %p226
      $region34: #{tpu_custom_call.1} parent=5 // pred_check_branch
        %229 = sbr.rel (%p227) target = $region36
      $region35: #{tpu_custom_call.1} parent=5 // pred_region
        // Predicated region
        $region37: #{tpu_custom_call.1} parent=35 // pred_check
          %p230 = pneg %p39
        $region38: #{tpu_custom_call.1} parent=35 // pred_check_branch
          %232 = sbr.rel (%p230) target = $region40
        $region39: #{tpu_custom_call.1} parent=35 // pred_region
          %s233 = sand.u32 %s29, 1
          %s234 = scalar_lea.sflag [#allocation3], %s233
          %s235 = sand.u32 %s29, 1
          %s236 = smul.addr %s235, 8
          %s237 = scalar_lea.vmem [#allocation2], %s236
          %s239 = ssub.s32 128, 128
          %240 = vsyncadd %s234, %s239
          %s241 = smul.addr %s19, 128
          %s242 = scalar_lea.hbm %s0, %s241
          %s244 = sshll.u32 %s237, 4
          %s245 = int_to_ptr.vmem [resolvable:$true] %s244
          %247 = dma.hbm_to_vmem [thread:$0]  %s242, 128, %s245, %s234
        $region40: #{tpu_custom_call.1} parent=35 // pred_fallthru
          _
      $region36: #{tpu_custom_call.1} parent=5 // pred_fallthru
        _
      %p248 = scmp.le.s32.totalorder 1, %s19
      %p249 = scmp.lt.s32.totalorder %s19, 3
      %p250 = pnand %p248, %p249
      %p251 = pneg %p250
      // Predicated region
      $region41: #{tpu_custom_call.1} parent=5 // pred_check
        _
      $region42: #{tpu_custom_call.1} parent=5 // pred_check_branch
        %253 = sbr.rel (%p250) target = $region44
      $region43: #{tpu_custom_call.1} parent=5 // pred_region
        %s254 = ssub.s32 %s19, 1
        %s255 = sand.u32 %s32, 1
        %s256 = scalar_lea.sflag [#allocation3], %s255
        %s257 = sand.u32 %s32, 1
        %s258 = smul.addr %s257, 8
        %s259 = scalar_lea.vmem [#allocation2], %s258
        // Predicated region
        $region45: #{tpu_custom_call.1} parent=43 // pred_check
          %p260 = pneg %p45
        $region46: #{tpu_custom_call.1} parent=43 // pred_check_branch
          %262 = sbr.rel (%p260) target = $region48
        $region47: #{tpu_custom_call.1} parent=43 // pred_region
          %263 = dma.done %s256, 128
        $region48: #{tpu_custom_call.1} parent=43 // pred_fallthru
          _
        // Predicated region
        $region49: #{tpu_custom_call.1} parent=43 // pred_check
          %p264 = pneg %p108
        $region50: #{tpu_custom_call.1} parent=43 // pred_check_branch
          %266 = sbr.rel (%p264) target = $region52
        $region51: #{tpu_custom_call.1} parent=43 // pred_region
          %267 = dma.done [#allocation6], 256
        $region52: #{tpu_custom_call.1} parent=43 // pred_fallthru
          _
        // Predicated region
        $region53: #{tpu_custom_call.1} parent=43 // pred_check
          %p268 = pneg %p129
        $region54: #{tpu_custom_call.1} parent=43 // pred_check_branch
          %270 = sbr.rel (%p268) target = $region56
        $region55: #{tpu_custom_call.1} parent=43 // pred_region
          %271 = dma.done [#allocation6], 256
        $region56: #{tpu_custom_call.1} parent=43 // pred_fallthru
          _
        %s272 = sand.u32 %s32, 1
        %s273 = scalar_lea.sflag [#allocation3], %s272
        %s274 = sand.u32 %s32, 1
        %s275 = smul.addr %s274, 8
        %s276 = scalar_lea.vmem [#allocation2], %s275
        %p277 = pneg %p45
        %p278 = pneg %p42
        %p279 = pneg %p66
        %p280 = pneg %p63
        %p281 = pneg %p87
        %p282 = pneg %p84
        %p283 = pneg %p108
        %p284 = pneg %p105
        %p285 = pneg %p129
        %p286 = pneg %p126
        %p287 = pneg %p150
        %p288 = pneg %p147
        %p289 = pneg %p176
        %p290 = pneg %p173
        %s291 = sand.u32 %s163, 1
        %s292 = scalar_lea.sflag [#allocation4], %s291
        %s293 = sand.u32 %s163, 1
        %s294 = smul.addr %s293, 8
        %s295 = scalar_lea.vmem [#allocation8], %s294
        %v297 = vld [vmem:[%s259] sm:$0xff]
        %vm298 = vcmask 261120
        %v299 = vsel %vm298, %v297, 0.0
        %300 = vadd.xlane.f32.xlu0 %v299
        %v301 = vpop.xlane.xlu0 %300
        %v302 = vrcp.pop 32.0
        %v303 = vmul.f32 %v301, %v302
        %v304 = vsub.f32 %v297, %v303
        %v305 = vmul.f32 %v304, %v304
        %v306 = vsel %vm298, %v305, 0.0
        %307 = vadd.xlane.f32.xlu0 %v306
        %v308 = vpop.xlane.xlu0 %307
        %v309 = vmul.f32 %v308, %v302
        %v310 = vadd.f32 %v309, 1e-05
        %v311 = vrsqrt.pop %v310
        %v312 = vmul.f32 %v304, %v311
        %v313 = vld [vmem:[%s1] sm:$0x1]
        %v315 = vlaneseq
        %v316 = vshrl.u32 %v315, 7
        %v317 = vsub.s32 0, %v316
        %v318 = vrot.slane %v313, %v317
        %v320 = vmul.f32 %v312, %v318
        %v321 = vld [vmem:[%s2] sm:$0x1]
        %v323 = vlaneseq
        %v324 = vshrl.u32 %v323, 7
        %v325 = vsub.s32 0, %v324
        %v326 = vrot.slane %v321, %v325
        %v328 = vadd.f32 %v320, %v326
        %v329 = vpack.c.bf16 %v328, %v328
        %v330 = vld [vmem:[#allocation5] sm:$0xf]
        %v331 = vld [vmem:[#allocation5 + $0x4] sm:$0xf]
        %v332 = vld [vmem:[#allocation5 + $0x8] sm:$0xf]
        %v333 = vld [vmem:[#allocation5 + $0xc] sm:$0xf]
        %v338 = vunpack.c.l.b16 %v330
        %v339 = vunpack.c.l.b16 %v331
        %v340 = vunpack.c.l.b16 %v332
        %v341 = vunpack.c.l.b16 %v333
        %v342 = vpack.c.b16 %v339, %v338
        %v343 = vpack.c.b16 %v341, %v340
        %v347 = vsel %vm298, %v329, 0
        %349 = vmatprep.subr.bf16.mxu0 0
        %350 = vmatpush1.bf16.msra.mxu0 0
        %351 = vmatprep.subr.bf16.mxu0 0
        %352 = vmatpush1.bf16.msra.mxu0 0
        %353 = vmatprep.subr.bf16.mxu0 0
        %354 = vmatpush1.bf16.msra.mxu0 0
        %355 = vmatprep.subr.bf16.mxu0 0
        %356 = vmatpush1.bf16.msra.mxu0 0
        %357 = vmatprep.subr.bf16.mxu0 0
        %358 = vmatpush1.bf16.msra.mxu0 0
        %359 = vmatprep.subr.bf16.mxu0 0
        %360 = vmatpush1.bf16.msra.mxu0 0
        %361 = vmatprep.subr.bf16.mxu0 0
        %362 = vmatpush1.bf16.msra.mxu0 %v343
        %363 = vmatprep.subr.bf16.mxu0 0
        %364 = vmatpush1.bf16.msra.mxu0 %v342
        %365 = vmatprep.subr.bf16.mxu0 0
        %366 = vmatpush2.bf16.msra.mxu0 0
        %367 = vmatprep.subr.bf16.mxu0 0
        %368 = vmatpush2.bf16.msra.mxu0 0
        %369 = vmatprep.subr.bf16.mxu0 0
        %370 = vmatpush2.bf16.msra.mxu0 0
        %371 = vmatprep.subr.bf16.mxu0 0
        %372 = vmatpush2.bf16.msra.mxu0 0
        %373 = vmatprep.subr.bf16.mxu0 0
        %374 = vmatpush2.bf16.msra.mxu0 0
        %375 = vmatprep.subr.bf16.mxu0 0
        %376 = vmatpush2.bf16.msra.mxu0 0
        %377 = vmatprep.subr.bf16.mxu0 0
        %378 = vmatpush2.bf16.msra.mxu0 0
        %379 = vmatprep.subr.bf16.mxu0 0
        %380 = vmatpush2.bf16.msra.mxu0 0
        %381 = vmatprep.mubr.bf16.mxu0 0
        %382 = vmatmul.mubr.bf16.gmra.mxu0 %v347
        %v383 = vpop.f32.mrf.mxu0
        %v384 = vadd.f32 0.0, %v383
        %v385 = vpop.f32.mrf.mxu0
        %v386 = vpop.f32.mrf.mxu0
        %v387 = vpop.f32.mrf.mxu0
        %388 = vdwg.mxu0
        %v389 = vmul.f32 %v384, 0.25
        %391 = vrot.lane.b32.xlu0 %v389, 112
        %v392 = vpop.permute.xlu0 %391
        %v394 = vpack.c.bf16 %v389, %v389
        %v395 = vpack.c.bf16 %v392, %v392
        %397 = vrot.lane.b32.xlu0 %v384, 112
        %v398 = vpop.permute.xlu0 %397
        %v400 = vpack.c.bf16 %v384, %v384
        %v401 = vpack.c.bf16 %v398, %v398
        %403 = vrot.lane.b32.xlu0 %v400, 96
        %v404 = vpop.permute.xlu0 %403
        %vm405 = vcmask 130048
        %v407 = vsel %vm405, %v394, 0
        %v410 = vsel %vm405, %v404, 0
        %412 = vmatprep.subr.bf16.mxu0 0
        %413 = vmatpush1.bf16.xpose.msra.mxu0 0
        %414 = vmatprep.subr.bf16.mxu0 0
        %415 = vmatpush1.bf16.xpose.msra.mxu0 0
        %416 = vmatprep.subr.bf16.mxu0 0
        %417 = vmatpush1.bf16.xpose.msra.mxu0 0
        %418 = vmatprep.subr.bf16.mxu0 0
        %419 = vmatpush1.bf16.xpose.msra.mxu0 0
        %420 = vmatprep.subr.bf16.mxu0 0
        %421 = vmatpush1.bf16.xpose.msra.mxu0 0
        %422 = vmatprep.subr.bf16.mxu0 0
        %423 = vmatpush1.bf16.xpose.msra.mxu0 0
        %424 = vmatprep.subr.bf16.mxu0 0
        %425 = vmatpush1.bf16.xpose.msra.mxu0 0
        %426 = vmatprep.subr.bf16.mxu0 0
        %427 = vmatpush1.bf16.xpose.msra.mxu0 %v410
        %428 = vmatprep.subr.bf16.mxu0 0
        %429 = vmatpush2.bf16.xpose.msra.mxu0 0
        %430 = vmatprep.subr.bf16.mxu0 0
        %431 = vmatpush2.bf16.xpose.msra.mxu0 0
        %432 = vmatprep.subr.bf16.mxu0 0
        %433 = vmatpush2.bf16.xpose.msra.mxu0 0
        %434 = vmatprep.subr.bf16.mxu0 0
        %435 = vmatpush2.bf16.xpose.msra.mxu0 0
        %436 = vmatprep.subr.bf16.mxu0 0
        %437 = vmatpush2.bf16.xpose.msra.mxu0 0
        %438 = vmatprep.subr.bf16.mxu0 0
        %439 = vmatpush2.bf16.xpose.msra.mxu0 0
        %440 = vmatprep.subr.bf16.mxu0 0
        %441 = vmatpush2.bf16.xpose.msra.mxu0 0
        %442 = vmatprep.subr.bf16.mxu0 0
        %443 = vmatpush2.bf16.xpose.msra.mxu0 0
        %444 = vmatprep.mubr.bf16.mxu0 0
        %445 = vmatmul.mubr.bf16.gmra.mxu0 %v407
        %v446 = vpop.f32.mrf.mxu0
        %v447 = vadd.f32 0.0, %v446
        %v448 = vpop.f32.mrf.mxu0
        %v449 = vpop.f32.mrf.mxu0
        %v450 = vpop.f32.mrf.mxu0
        %451 = vdwg.mxu0
        %453 = vrot.lane.b32.xlu0 %v401, 96
        %v454 = vpop.permute.xlu0 %453
        %v456 = vsel %vm405, %v395, 0
        %v459 = vsel %vm405, %v454, 0
        %461 = vmatprep.subr.bf16.mxu0 0
        %462 = vmatpush1.bf16.xpose.msra.mxu0 0
        %463 = vmatprep.subr.bf16.mxu0 0
        %464 = vmatpush1.bf16.xpose.msra.mxu0 0
        %465 = vmatprep.subr.bf16.mxu0 0
        %466 = vmatpush1.bf16.xpose.msra.mxu0 0
        %467 = vmatprep.subr.bf16.mxu0 0
        %468 = vmatpush1.bf16.xpose.msra.mxu0 0
        %469 = vmatprep.subr.bf16.mxu0 0
        %470 = vmatpush1.bf16.xpose.msra.mxu0 0
        %471 = vmatprep.subr.bf16.mxu0 0
        %472 = vmatpush1.bf16.xpose.msra.mxu0 0
        %473 = vmatprep.subr.bf16.mxu0 0
        %474 = vmatpush1.bf16.xpose.msra.mxu0 0
        %475 = vmatprep.subr.bf16.mxu0 0
        %476 = vmatpush1.bf16.xpose.msra.mxu0 %v459
        %477 = vmatprep.subr.bf16.mxu0 0
        %478 = vmatpush2.bf16.xpose.msra.mxu0 0
        %479 = vmatprep.subr.bf16.mxu0 0
        %480 = vmatpush2.bf16.xpose.msra.mxu0 0
        %481 = vmatprep.subr.bf16.mxu0 0
        %482 = vmatpush2.bf16.xpose.msra.mxu0 0
        %483 = vmatprep.subr.bf16.mxu0 0
        %484 = vmatpush2.bf16.xpose.msra.mxu0 0
        %485 = vmatprep.subr.bf16.mxu0 0
        %486 = vmatpush2.bf16.xpose.msra.mxu0 0
        %487 = vmatprep.subr.bf16.mxu0 0
        %488 = vmatpush2.bf16.xpose.msra.mxu0 0
        %489 = vmatprep.subr.bf16.mxu0 0
        %490 = vmatpush2.bf16.xpose.msra.mxu0 0
        %491 = vmatprep.subr.bf16.mxu0 0
        %492 = vmatpush2.bf16.xpose.msra.mxu0 0
        %493 = vmatprep.mubr.bf16.mxu0 0
        %494 = vmatmul.mubr.bf16.gmra.mxu0 %v456
        %v495 = vpop.f32.mrf.mxu0
        %v496 = vadd.f32 0.0, %v495
        %v497 = vpop.f32.mrf.mxu0
        %v498 = vpop.f32.mrf.mxu0
        %v499 = vpop.f32.mrf.mxu0
        %500 = vdwg.mxu0
        %vm501 = vcmask 64512
        %v502 = vsel %vm501, %v447, -inf
        %503 = vmax.xlane.f32.xlu0 %v502
        %v504 = vpop.xlane.xlu0 %503
        %v505 = vsel %vm501, %v496, -inf
        %506 = vmax.xlane.f32.xlu0 %v505
        %v507 = vpop.xlane.xlu0 %506
        %v508 = vsub.f32 %v447, %v504
        %v509 = vsub.f32 %v496, %v507
        %v510 = vmul.f32 %v508, 1.442695
        %v511 = vpow.pop %v510
        %v512 = vmul.f32 %v509, 1.442695
        %v513 = vpow.pop %v512
        %v514 = vsel %vm501, %v511, 0.0
        %515 = vadd.xlane.f32.xlu0 %v514
        %v516 = vpop.xlane.xlu0 %515
        %v517 = vsel %vm501, %v513, 0.0
        %518 = vadd.xlane.f32.xlu0 %v517
        %v519 = vpop.xlane.xlu0 %518
        %v520 = vpack.c.bf16 %v511, %v511
        %v521 = vpack.c.bf16 %v513, %v513
        %522 = vrot.lane.b32.xlu0 %v400, 64
        %v523 = vpop.permute.xlu0 %522
        %v525 = vsel %vm501, %v520, 0
        %vm527 = vcmask 1043456
        %v529 = vsel %vm527, %v523, 0
        %531 = vmatprep.subr.bf16.mxu0 0
        %532 = vmatpush1.bf16.msra.mxu0 0
        %533 = vmatprep.subr.bf16.mxu0 0
        %534 = vmatpush1.bf16.msra.mxu0 0
        %535 = vmatprep.subr.bf16.mxu0 0
        %536 = vmatpush1.bf16.msra.mxu0 0
        %537 = vmatprep.subr.bf16.mxu0 0
        %538 = vmatpush1.bf16.msra.mxu0 0
        %539 = vmatprep.subr.bf16.mxu0 0
        %540 = vmatpush1.bf16.msra.mxu0 0
        %541 = vmatprep.subr.bf16.mxu0 0
        %542 = vmatpush1.bf16.msra.mxu0 0
        %543 = vmatprep.subr.bf16.mxu0 0
        %544 = vmatpush1.bf16.msra.mxu0 0
        %545 = vmatprep.subr.bf16.mxu0 0
        %546 = vmatpush1.bf16.msra.mxu0 %v529
        %547 = vmatprep.subr.bf16.mxu0 0
        %548 = vmatpush2.bf16.msra.mxu0 0
        %549 = vmatprep.subr.bf16.mxu0 0
        %550 = vmatpush2.bf16.msra.mxu0 0
        %551 = vmatprep.subr.bf16.mxu0 0
        %552 = vmatpush2.bf16.msra.mxu0 0
        %553 = vmatprep.subr.bf16.mxu0 0
        %554 = vmatpush2.bf16.msra.mxu0 0
        %555 = vmatprep.subr.bf16.mxu0 0
        %556 = vmatpush2.bf16.msra.mxu0 0
        %557 = vmatprep.subr.bf16.mxu0 0
        %558 = vmatpush2.bf16.msra.mxu0 0
        %559 = vmatprep.subr.bf16.mxu0 0
        %560 = vmatpush2.bf16.msra.mxu0 0
        %561 = vmatprep.subr.bf16.mxu0 0
        %562 = vmatpush2.bf16.msra.mxu0 0
        %563 = vmatprep.mubr.bf16.mxu0 0
        %564 = vmatmul.mubr.bf16.gmra.mxu0 %v525
        %v565 = vpop.f32.mrf.mxu0
        %v566 = vadd.f32 0.0, %v565
        %v567 = vpop.f32.mrf.mxu0
        %v568 = vpop.f32.mrf.mxu0
        %v569 = vpop.f32.mrf.mxu0
        %570 = vdwg.mxu0
        %571 = vrot.lane.b32.xlu0 %v401, 64
        %v572 = vpop.permute.xlu0 %571
        %v574 = vsel %vm501, %v521, 0
        %v577 = vsel %vm527, %v572, 0
        %579 = vmatprep.subr.bf16.mxu0 0
        %580 = vmatpush1.bf16.msra.mxu0 0
        %581 = vmatprep.subr.bf16.mxu0 0
        %582 = vmatpush1.bf16.msra.mxu0 0
        %583 = vmatprep.subr.bf16.mxu0 0
        %584 = vmatpush1.bf16.msra.mxu0 0
        %585 = vmatprep.subr.bf16.mxu0 0
        %586 = vmatpush1.bf16.msra.mxu0 0
        %587 = vmatprep.subr.bf16.mxu0 0
        %588 = vmatpush1.bf16.msra.mxu0 0
        %589 = vmatprep.subr.bf16.mxu0 0
        %590 = vmatpush1.bf16.msra.mxu0 0
        %591 = vmatprep.subr.bf16.mxu0 0
        %592 = vmatpush1.bf16.msra.mxu0 0
        %593 = vmatprep.subr.bf16.mxu0 0
        %594 = vmatpush1.bf16.msra.mxu0 %v577
        %595 = vmatprep.subr.bf16.mxu0 0
        %596 = vmatpush2.bf16.msra.mxu0 0
        %597 = vmatprep.subr.bf16.mxu0 0
        %598 = vmatpush2.bf16.msra.mxu0 0
        %599 = vmatprep.subr.bf16.mxu0 0
        %600 = vmatpush2.bf16.msra.mxu0 0
        %601 = vmatprep.subr.bf16.mxu0 0
        %602 = vmatpush2.bf16.msra.mxu0 0
        %603 = vmatprep.subr.bf16.mxu0 0
        %604 = vmatpush2.bf16.msra.mxu0 0
        %605 = vmatprep.subr.bf16.mxu0 0
        %606 = vmatpush2.bf16.msra.mxu0 0
        %607 = vmatprep.subr.bf16.mxu0 0
        %608 = vmatpush2.bf16.msra.mxu0 0
        %609 = vmatprep.subr.bf16.mxu0 0
        %610 = vmatpush2.bf16.msra.mxu0 0
        %611 = vmatprep.mubr.bf16.mxu0 0
        %612 = vmatmul.mubr.bf16.gmra.mxu0 %v574
        %v613 = vpop.f32.mrf.mxu0
        %v614 = vadd.f32 0.0, %v613
        %v615 = vpop.f32.mrf.mxu0
        %v616 = vpop.f32.mrf.mxu0
        %v617 = vpop.f32.mrf.mxu0
        %618 = vdwg.mxu0
        %v619 = vrcp.pop %v516
        %v620 = vrcp.pop %v519
        %v621 = vmul.f32 %v566, %v619
        %v622 = vmul.f32 %v614, %v620
        %624 = vrot.lane.b32.xlu0 %v622, 16
        %v625 = vpop.permute.xlu0 %624
        %v627 = vsel %vm405, %v621, %v625
        %v628 = vpack.c.bf16 %v627, %v627
        %v629 = vld [vmem:[#allocation7] sm:$0xf]
        %v630 = vld [vmem:[#allocation7 + $0x4] sm:$0xf]
        %v631 = vld [vmem:[#allocation7 + $0x8] sm:$0xf]
        %v632 = vld [vmem:[#allocation7 + $0xc] sm:$0xf]
        %v633 = vld [vmem:[%s5] sm:$0x1]
        %v635 = vlaneseq
        %v636 = vshrl.u32 %v635, 7
        %v637 = vsub.s32 0, %v636
        %v638 = vrot.slane %v633, %v637
        %v644 = vunpack.c.l.b16 %v629
        %v645 = vunpack.c.l.b16 %v630
        %v646 = vunpack.c.l.b16 %v631
        %v647 = vunpack.c.l.b16 %v632
        %v648 = vpack.c.b16 %v645, %v644
        %v649 = vpack.c.b16 %v647, %v646
        %v653 = vsel %vm298, %v628, 0
        %655 = vmatprep.subr.bf16.mxu0 0
        %656 = vmatpush1.bf16.msra.mxu0 0
        %657 = vmatprep.subr.bf16.mxu0 0
        %658 = vmatpush1.bf16.msra.mxu0 0
        %659 = vmatprep.subr.bf16.mxu0 0
        %660 = vmatpush1.bf16.msra.mxu0 0
        %661 = vmatprep.subr.bf16.mxu0 0
        %662 = vmatpush1.bf16.msra.mxu0 0
        %663 = vmatprep.subr.bf16.mxu0 0
        %664 = vmatpush1.bf16.msra.mxu0 0
        %665 = vmatprep.subr.bf16.mxu0 0
        %666 = vmatpush1.bf16.msra.mxu0 0
        %667 = vmatprep.subr.bf16.mxu0 0
        %668 = vmatpush1.bf16.msra.mxu0 %v649
        %669 = vmatprep.subr.bf16.mxu0 0
        %670 = vmatpush1.bf16.msra.mxu0 %v648
        %671 = vmatprep.subr.bf16.mxu0 0
        %672 = vmatpush2.bf16.msra.mxu0 0
        %673 = vmatprep.subr.bf16.mxu0 0
        %674 = vmatpush2.bf16.msra.mxu0 0
        %675 = vmatprep.subr.bf16.mxu0 0
        %676 = vmatpush2.bf16.msra.mxu0 0
        %677 = vmatprep.subr.bf16.mxu0 0
        %678 = vmatpush2.bf16.msra.mxu0 0
        %679 = vmatprep.subr.bf16.mxu0 0
        %680 = vmatpush2.bf16.msra.mxu0 0
        %681 = vmatprep.subr.bf16.mxu0 0
        %682 = vmatpush2.bf16.msra.mxu0 0
        %683 = vmatprep.subr.bf16.mxu0 0
        %684 = vmatpush2.bf16.msra.mxu0 0
        %685 = vmatprep.subr.bf16.mxu0 0
        %686 = vmatpush2.bf16.msra.mxu0 0
        %687 = vmatprep.mubr.bf16.mxu0 0
        %688 = vmatmul.mubr.bf16.gmra.mxu0 %v653
        %v689 = vpop.f32.mrf.mxu0
        %v690 = vadd.f32 %v638, %v689
        %v691 = vpop.f32.mrf.mxu0
        %v692 = vpop.f32.mrf.mxu0
        %v693 = vpop.f32.mrf.mxu0
        %694 = vdwg.mxu0
        %695 = vst.msk [vmem:[%s295] sm:$0xff] %vm298, %v690
        %s696 = sand.u32 %s163, 1
        %s697 = scalar_lea.sflag [#allocation4], %s696
        %s698 = sand.u32 %s163, 1
        %s699 = smul.addr %s698, 8
        %s700 = scalar_lea.vmem [#allocation8], %s699
        // Predicated region
        $region57: #{tpu_custom_call.1} parent=43 // pred_check
          %p701 = pneg %p173
        $region58: #{tpu_custom_call.1} parent=43 // pred_check_branch
          %703 = sbr.rel (%p701) target = $region60
        $region59: #{tpu_custom_call.1} parent=43 // pred_region
          %s705 = ssub.s32 128, 128
          %706 = vsyncadd %s697, %s705
          %s707 = smul.addr %s24, 128
          %s708 = scalar_lea.hbm %s6, %s707
          %s710 = sshll.u32 %s700, 4
          %s711 = int_to_ptr.vmem [resolvable:$true] %s710
          %713 = dma.vmem_to_hbm [thread:$0]  %s711, 128, %s708, %s697
        $region60: #{tpu_custom_call.1} parent=43 // pred_fallthru
          _
      $region44: #{tpu_custom_call.1} parent=5 // pred_fallthru
        _
      %p714 = scmp.le.s32.totalorder 2, %s19
      // Predicated region
      $region61: #{tpu_custom_call.1} parent=5 // pred_check
        %p715 = pneg %p714
      $region62: #{tpu_custom_call.1} parent=5 // pred_check_branch
        %717 = sbr.rel (%p715) target = $region64
      $region63: #{tpu_custom_call.1} parent=5 // pred_region
        %s718 = ssub.s32 %s19, 2
        // Predicated region
        $region65: #{tpu_custom_call.1} parent=63 // pred_check
          %p719 = pneg %p179
        $region66: #{tpu_custom_call.1} parent=63 // pred_check_branch
          %721 = sbr.rel (%p719) target = $region68
        $region67: #{tpu_custom_call.1} parent=63 // pred_region
          %s722 = sand.u32 %s164, 1
          %s723 = scalar_lea.sflag [#allocation4], %s722
          %s724 = sand.u32 %s164, 1
          %s725 = smul.addr %s724, 8
          %s726 = scalar_lea.vmem [#allocation8], %s725
          %727 = dma.done %s723, 128
        $region68: #{tpu_custom_call.1} parent=63 // pred_fallthru
          _
      $region64: #{tpu_custom_call.1} parent=5 // pred_fallthru
        _
    $region6: #{tpu_custom_call.1} parent=1 // loop_footer
      %s23 = sadd.s32 1, %s19
    $region7: #{tpu_custom_call.1} parent=1 // loop_footer_branch
      %18 = sbr.rel target = $region3
    $region8: #{tpu_custom_call.1} parent=1 // loop_exit
      _
    %728 = vsyncpa [#allocation3], 1
    %s729 = scalar_lea.sflag [#allocation3], 1
    %730 = vsyncpa %s729, 1
    %731 = vsyncpa [#allocation6], 1
    %732 = vsyncpa [#allocation4], 1
    %s733 = scalar_lea.sflag [#allocation4], 1
    %734 = vsyncpa %s733, 1

</llo_original>
